<compile_context>
chip_gen: v6e
topology: v6e:2x2x1
jax: 0.10.0
libtpu: 0.0.40
codegen_flags: <defaults>
</compile_context>

<pallas_src>
import functools

import jax
import jax.numpy as jnp
from jax.experimental import pallas as pl
from jax.experimental.pallas import tpu as pltpu

LANE = 128
MAX_TILE_ROWS = 2048  # (2048,128) f32 block = 1 MiB; 2 inputs x 2 bufs = 4 MiB VMEM


def _pow_static(x, gamma: float):
    """x**gamma for x >= 0 with cheap half-integer fast paths; gamma is static."""
    g = float(gamma)
    if g == 0.0:
        return jnp.ones_like(x)
    if g == 0.5:
        return jnp.sqrt(x)
    if g == 1.0:
        return x
    if g == 1.5:
        return x * jnp.sqrt(x)
    if g == 2.0:
        return x * x
    if g == 2.5:
        return (x * x) * jnp.sqrt(x)
    if g == 3.0:
        return (x * x) * x
    if g == 4.0:
        xx = x * x
        return xx * xx
    return jnp.power(x, jnp.float32(g))


def _elementwise_terms(p, t, alpha: float, gamma: float, binary_targets: bool):
    """Per-element BCE and alpha_t*(1-p_t)**gamma (f32 inputs, f32 outputs)."""
    # 1 - p_t = p + t - 2*p*t  (clamp tiny negative rounding so sqrt stays real)
    one_minus_pt = jnp.maximum(p + t - 2.0 * (p * t), 0.0)

    if binary_targets:
        # Exact only for hard {0,1} targets: BCE = -clamp(log(p_t), -100). One log.
        bce = -jnp.maximum(jnp.log(1.0 - one_minus_pt), -100.0)
    else:
        # General form matching torch BCELoss (each log clamped at -100).
        log_p = jnp.maximum(jnp.log(p), -100.0)
        log_1mp = jnp.maximum(jnp.log(1.0 - p), -100.0)
        bce = -(log_1mp + t * (log_p - log_1mp))

    focal = _pow_static(one_minus_pt, gamma)
    if alpha >= 0:
        # alpha_t = alpha*t + (1-alpha)*(1-t) = (1-alpha) + (2*alpha-1)*t
        focal = ((1.0 - alpha) + (2.0 * alpha - 1.0) * t) * focal
    return bce, focal


def _focal_sums_kernel(
    p_ref, t_ref, bce_out_ref, foc_out_ref, bce_acc, foc_acc,
    *, alpha, gamma, rows, tile_rows, tiles_per_core, num_tiles, binary_targets,
):
    """Per-core accumulation of sum(BCE) and sum(alpha_t * (1-p_t)**gamma)."""
    c = pl.program_id(0)          # leading axis -> megacore split on v7x
    i = pl.program_id(1)          # reduction axis ("arbitrary", last)
    g = c * tiles_per_core + i    # global tile index

    @pl.when(i == 0)
    def _():
        bce_acc[...] = jnp.zeros_like(bce_acc)
        foc_acc[...] = jnp.zeros_like(foc_acc)

    acc_rows = bce_acc.shape[0]

    def _fold(x):
        # Fold tile rows down to the accumulator height with pure VPU adds
        # (no cross-lane XLU work, no full-tile VMEM store traffic).
        if acc_rows == tile_rows:
            return x
        return x.reshape(tile_rows // acc_rows, acc_rows, LANE).sum(axis=0)

    def _accumulate(mask_rows: bool):
        p = p_ref[...].astype(jnp.float32)
        t = t_ref[...].astype(jnp.float32)
        bce, focal = _elementwise_terms(p, t, alpha, gamma, binary_targets)
        if mask_rows:
            # Only the single ragged last tile is masked, and only by row: the
            # wrapper feeds exclusively lane-aligned rows, so no lane test.
            row_ids = g * tile_rows + jax.lax.broadcasted_iota(jnp.int32, p.shape, 0)
            valid = row_ids < rows
            bce = jnp.where(valid, bce, 0.0)
            focal = jnp.where(valid, focal, 0.0)
        bce_acc[...] += _fold(bce)
        foc_acc[...] += _fold(focal)

    tail_rows = rows % tile_rows  # static
    if tail_rows == 0:
        @pl.when(g < num_tiles)          # skip clamped overflow tiles (odd split)
        def _():
            _accumulate(False)
    else:
        @pl.when(g < num_tiles - 1)      # interior tiles: unmasked hot path
        def _():
            _accumulate(False)

        @pl.when(g == num_tiles - 1)     # ragged last tile: row-mask only
        def _():
            _accumulate(True)

    @pl.when(i == pl.num_programs(1) - 1)
    def _():
        bce_out_ref[...] = jnp.sum(bce_acc[...], keepdims=True)
        foc_out_ref[...] = jnp.sum(foc_acc[...], keepdims=True)


def focal_loss(inputs, targets, alpha: float = 0.25, gamma: float = 1.5, *,
               binary_targets: bool = False, max_tile_rows: int = MAX_TILE_ROWS):
    inputs = jnp.asarray(inputs)
    targets = jnp.asarray(targets)
    assert inputs.shape == targets.shape
    assert inputs.ndim >= 2, "need a dim-1 (channel) axis for .mean(1)"
    channels = inputs.shape[1]
    n_total = int(inputs.size)

    p_flat = inputs.reshape(-1)      # contiguous reshape: free
    t_flat = targets.reshape(-1)

    rows = n_total // LANE
    n_main = rows * LANE
    tail = n_total - n_main

    bce_sum = jnp.float32(0.0)
    foc_sum = jnp.float32(0.0)

    if rows > 0:
        # Lane-aligned prefix goes through the kernel in its native dtype; no
        # padded copy of the full tensors.
        p_main = p_flat if tail == 0 else p_flat[:n_main]
        t_main = t_flat if tail == 0 else t_flat[:n_main]
        p2d = p_main.reshape(rows, LANE)
        t2d = t_main.reshape(rows, LANE)

        # Tile sizing: the full row extent when it fits (always a legal block),
        # otherwise big multiple-of-8 tiles for near-roofline DMA.
        tile_rows = rows if rows <= max_tile_rows else int(max_tile_rows)
        num_tiles = -(-rows // tile_rows)
        ncores = 2 if num_tiles >= 2 else 1     # v7x 2-TC split; loop of 2 elsewhere
        tiles_per_core = -(-num_tiles // ncores)
        grid = (ncores, tiles_per_core)
        acc_rows = 8 if tile_rows % 8 == 0 else tile_rows

        def in_index_map(c, i):
            g = c * tiles_per_core + i
            # Clamp so the (compute-skipped) overflow tile of an odd split never
            # indexes past the array.
            return (jnp.minimum(g, num_tiles - 1), 0)

        kernel = functools.partial(
            _focal_sums_kernel,
            alpha=float(alpha), gamma=float(gamma), rows=int(rows),
            tile_rows=int(tile_rows), tiles_per_core=int(tiles_per_core),
            num_tiles=int(num_tiles), binary_targets=bool(binary_targets),
        )

        in_bytes = n_main * (p2d.dtype.itemsize + t2d.dtype.itemsize)
        cost = pl.CostEstimate(
            flops=14 * n_main,
            transcendentals=(2 if binary_targets else 3) * n_main,  # logs + sqrt
            bytes_accessed=in_bytes + 8 * ncores,
        )

        bce_parts, foc_parts = pl.pallas_call(
            kernel,
            out_shape=(
                jax.ShapeDtypeStruct((ncores, 1), jnp.float32),
                jax.ShapeDtypeStruct((ncores, 1), jnp.float32),
            ),
            grid=grid,
            in_specs=[
                pl.BlockSpec((tile_rows, LANE), in_index_map),
                pl.BlockSpec((tile_rows, LANE), in_index_map),
            ],
            out_specs=(
                pl.BlockSpec((1, 1), lambda c, i: (c, 0)),
                pl.BlockSpec((1, 1), lambda c, i: (c, 0)),
            ),
            scratch_shapes=[
                pltpu.VMEM((acc_rows, LANE), jnp.float32),
                pltpu.VMEM((acc_rows, LANE), jnp.float32),
            ],
            compiler_params=pltpu.CompilerParams(
                # TODO(synk): confirm with a trace that the leading size-2 axis
                # actually shards across v7x's 2 TensorCores; if not, switch it
                # to pltpu.CORE_PARALLEL.
                dimension_semantics=("parallel", "arbitrary"),
                vmem_limit_bytes=32 * 1024 * 1024,
            ),
            cost_estimate=cost,
        )(p2d, t2d)

        bce_sum = jnp.sum(bce_parts)
        foc_sum = jnp.sum(foc_parts)

    if tail > 0:
        # <=127 ragged elements: fold into the sums with plain jnp (no copy of
        # the full tensors, negligible work).
        p_tail = p_flat[n_main:].astype(jnp.float32)
        t_tail = t_flat[n_main:].astype(jnp.float32)
        bce_t, foc_t = _elementwise_terms(p_tail, t_tail, float(alpha),
                                          float(gamma), bool(binary_targets))
        bce_sum = bce_sum + jnp.sum(bce_t)
        foc_sum = foc_sum + jnp.sum(foc_t)

    ce_loss = bce_sum / jnp.float32(n_total)           # BCELoss mean reduction
    # loss.mean(1).sum() == ce_loss * sum(alpha_t * (1-p_t)**gamma) / C
    return ce_loss * foc_sum / jnp.float32(channels)


def focal_loss_ref(inputs, targets, alpha: float = 0.25, gamma: float = 1.5):
    """Pure-JAX reference matching the PyTorch module."""
    p = inputs.astype(jnp.float32)
    t = targets.astype(jnp.float32)
    log_p = jnp.maximum(jnp.log(p), -100.0)
    log_1mp = jnp.maximum(jnp.log(1.0 - p), -100.0)
    ce_loss = jnp.mean(-(t * log_p + (1.0 - t) * log_1mp))
    p_t = p * t + (1.0 - p) * (1.0 - t)
    loss = ce_loss * (1.0 - p_t) ** gamma
    if alpha >= 0:
        alpha_t = alpha * t + (1.0 - alpha) * (1.0 - t)
        loss = alpha_t * loss
    return loss.mean(axis=1).sum()


if __name__ == "__main__":
    key = jax.random.PRNGKey(0)
    k1, k2, k3, k4, k5, k6 = jax.random.split(key, 6)

    # Primary case: small NCHW shape matching the module's usage (lane-aligned).
    B, C, H, W = 2, 4, 16, 16
    inputs = jax.random.uniform(k1, (B, C, H, W), jnp.float32, minval=0.02, maxval=0.98)
    targets = jax.random.bernoulli(k2, 0.3, (B, C, H, W)).astype(jnp.float32)
    ref = focal_loss_ref(inputs, targets, alpha=0.25, gamma=1.5)
    out = jax.block_until_ready(focal_loss(inputs, targets, alpha=0.25, gamma=1.5))
    assert jnp.allclose(out, ref, rtol=1e-4, atol=1e-5), (out, ref)
    # Binary-target single-log fast path (targets here are hard {0,1}).
    out_b = jax.block_until_ready(
        focal_loss(inputs, targets, alpha=0.25, gamma=1.5, binary_targets=True))
    assert jnp.allclose(out_b, ref, rtol=1e-4, atol=1e-5), (out_b, ref)

    # Ragged case: numel not a multiple of 128 -> exercises the wrapper tail path.
    shape2 = (2, 3, 7, 9)
    inputs2 = jax.random.uniform(k3, shape2, jnp.float32, minval=0.02, maxval=0.98)
    targets2 = jax.random.bernoulli(k4, 0.5, shape2).astype(jnp.float32)
    out2 = jax.block_until_ready(focal_loss(inputs2, targets2, alpha=0.25, gamma=1.5))
    ref2 = focal_loss_ref(inputs2, targets2, alpha=0.25, gamma=1.5)
    assert jnp.allclose(out2, ref2, rtol=1e-4, atol=1e-5), (out2, ref2)

    # bf16 native-dtype inputs, small max_tile_rows to exercise the multi-tile
    # path, the row-masked ragged last tile, the 2-way core split, and the
    # compute-skipped overflow tile (num_tiles=3, ncores=2).
    shape3 = (2, 4, 160, 128)
    inputs3 = jax.random.uniform(k5, shape3, jnp.float32,
                                 minval=0.02, maxval=0.98).astype(jnp.bfloat16)
    targets3 = jax.random.bernoulli(k6, 0.3, shape3).astype(jnp.bfloat16)
    out3 = jax.block_until_ready(
        focal_loss(inputs3, targets3, alpha=0.25, gamma=1.5, max_tile_rows=512))
    ref3 = focal_loss_ref(inputs3, targets3, alpha=0.25, gamma=1.5)
    assert jnp.allclose(out3, ref3, rtol=2e-4, atol=1e-3), (out3, ref3)

    print("KERNEL_OK")
</pallas_src>

<mosaic_0001>
module attributes {stable_mosaic.version = 11 : i64} {
  func.func @_focal_sums_kernel(%arg0: i32, %arg1: i32, %arg2: memref<16x128xf32, #tpu.memory_space<vmem>>, %arg3: memref<16x128xf32, #tpu.memory_space<vmem>>, %arg4: memref<1x1xf32, #tpu.memory_space<vmem>>, %arg5: memref<1x1xf32, #tpu.memory_space<vmem>>, %arg6: memref<8x128xf32, #tpu.memory_space<vmem>>, %arg7: memref<8x128xf32, #tpu.memory_space<vmem>>) attributes {dimension_semantics = [#tpu.dimension_semantics<parallel>, #tpu.dimension_semantics<arbitrary>], iteration_bounds = array<i64: 1, 1>, scalar_prefetch = 0 : i64, scratch_operands = 2 : i64, tpu.core_type = #tpu.core_type<tc>, window_params = [{transform_indices = @transform_0, window_bounds = array<i64: 16, 128>}, {transform_indices = @transform_1, window_bounds = array<i64: 16, 128>}, {transform_indices = @transform_2, window_bounds = array<i64: 1, 1>}, {transform_indices = @transform_3, window_bounds = array<i64: 1, 1>}]} {
    %c1_i32 = arith.constant 1 : i32
    %0 = arith.muli %arg0, %c1_i32 : i32
    %1 = arith.addi %0, %arg1 : i32
    %c0_i32 = arith.constant 0 : i32
    %2 = arith.cmpi eq, %arg1, %c0_i32 : i32
    %3 = arith.extui %2 : i1 to i32
    %c0_i32_0 = arith.constant 0 : i32
    %4 = arith.cmpi ne, %3, %c0_i32_0 : i32
    scf.if %4 {
      %cst = arith.constant 0.000000e+00 : f32
      %11 = vector.broadcast %cst : f32 to vector<8x128xf32>
      %c0 = arith.constant 0 : index
      %c0_5 = arith.constant 0 : index
      %12 = vector.load %arg6[%c0, %c0_5] : memref<8x128xf32, #tpu.memory_space<vmem>>, vector<8x128xf32>
      tpu.vector_store %arg6[%c0, %c0_5], %11 {strides = array<i32>} : memref<8x128xf32, #tpu.memory_space<vmem>>, vector<8x128xf32>,
      %cst_6 = arith.constant 0.000000e+00 : f32
      %13 = vector.broadcast %cst_6 : f32 to vector<8x128xf32>
      %c0_7 = arith.constant 0 : index
      %c0_8 = arith.constant 0 : index
      %14 = vector.load %arg7[%c0_7, %c0_8] : memref<8x128xf32, #tpu.memory_space<vmem>>, vector<8x128xf32>
      tpu.vector_store %arg7[%c0_7, %c0_8], %13 {strides = array<i32>} : memref<8x128xf32, #tpu.memory_space<vmem>>, vector<8x128xf32>,
    } else {
    }
    %c1_i32_1 = arith.constant 1 : i32
    %5 = arith.cmpi slt, %1, %c1_i32_1 : i32
    %6 = arith.extui %5 : i1 to i32
    %c0_i32_2 = arith.constant 0 : i32
    %7 = arith.cmpi ne, %6, %c0_i32_2 : i32
    scf.if %7 {
      %c0 = arith.constant 0 : index
      %c0_5 = arith.constant 0 : index
      %11 = vector.load %arg2[%c0, %c0_5] : memref<16x128xf32, #tpu.memory_space<vmem>>, vector<16x128xf32>
      %c0_6 = arith.constant 0 : index
      %c0_7 = arith.constant 0 : index
      %12 = vector.load %arg3[%c0_6, %c0_7] : memref<16x128xf32, #tpu.memory_space<vmem>>, vector<16x128xf32>
      %13 = arith.addf %11, %12 : vector<16x128xf32>
      %14 = arith.mulf %11, %12 : vector<16x128xf32>
      %cst = arith.constant 2.000000e+00 : f32
      %15 = vector.broadcast %cst : f32 to vector<16x128xf32>
      %16 = arith.mulf %15, %14 : vector<16x128xf32>
      %17 = arith.subf %13, %16 : vector<16x128xf32>
      %cst_8 = arith.constant 0.000000e+00 : f32
      %18 = vector.broadcast %cst_8 : f32 to vector<16x128xf32>
      %19 = arith.maximumf %17, %18 : vector<16x128xf32>
      %20 = math.log %11 : vector<16x128xf32>
      %cst_9 = arith.constant -1.000000e+02 : f32
      %21 = vector.broadcast %cst_9 : f32 to vector<16x128xf32>
      %22 = arith.maximumf %20, %21 : vector<16x128xf32>
      %cst_10 = arith.constant 1.000000e+00 : f32
      %23 = vector.broadcast %cst_10 : f32 to vector<16x128xf32>
      %24 = arith.subf %23, %11 : vector<16x128xf32>
      %25 = math.log %24 : vector<16x128xf32>
      %cst_11 = arith.constant -1.000000e+02 : f32
      %26 = vector.broadcast %cst_11 : f32 to vector<16x128xf32>
      %27 = arith.maximumf %25, %26 : vector<16x128xf32>
      %28 = arith.subf %22, %27 : vector<16x128xf32>
      %29 = arith.mulf %12, %28 : vector<16x128xf32>
      %30 = arith.addf %27, %29 : vector<16x128xf32>
      %cst_12 = arith.constant 0.000000e+00 : f32
      %31 = vector.broadcast %cst_12 : f32 to vector<16x128xf32>
      %32 = arith.subf %31, %30 : vector<16x128xf32>
      %33 = math.sqrt %19 : vector<16x128xf32>
      %34 = arith.mulf %19, %33 : vector<16x128xf32>
      %cst_13 = arith.constant -5.000000e-01 : f32
      %35 = vector.broadcast %cst_13 : f32 to vector<16x128xf32>
      %36 = arith.mulf %35, %12 : vector<16x128xf32>
      %cst_14 = arith.constant 7.500000e-01 : f32
      %37 = vector.broadcast %cst_14 : f32 to vector<16x128xf32>
      %38 = arith.addf %37, %36 : vector<16x128xf32>
      %39 = arith.mulf %38, %34 : vector<16x128xf32>
      %c0_15 = arith.constant 0 : index
      %c0_16 = arith.constant 0 : index
      %40 = vector.load %arg6[%c0_15, %c0_16] : memref<8x128xf32, #tpu.memory_space<vmem>>, vector<8x128xf32>
      %41 = vector.shape_cast %32 : vector<16x128xf32> to vector<2x8x128xf32>
      %cst_17 = arith.constant dense<0.000000e+00> : vector<8x128xf32>
      %42 = vector.multi_reduction <add>, %41, %cst_17 [0] : vector<2x8x128xf32> to vector<8x128xf32>
      %43 = arith.addf %40, %42 : vector<8x128xf32>
      %c0_18 = arith.constant 0 : index
      %c0_19 = arith.constant 0 : index
      %44 = vector.load %arg6[%c0_18, %c0_19] : memref<8x128xf32, #tpu.memory_space<vmem>>, vector<8x128xf32>
      tpu.vector_store %arg6[%c0_18, %c0_19], %43 {strides = array<i32>} : memref<8x128xf32, #tpu.memory_space<vmem>>, vector<8x128xf32>,
      %c0_20 = arith.constant 0 : index
      %c0_21 = arith.constant 0 : index
      %45 = vector.load %arg7[%c0_20, %c0_21] : memref<8x128xf32, #tpu.memory_space<vmem>>, vector<8x128xf32>
      %46 = vector.shape_cast %39 : vector<16x128xf32> to vector<2x8x128xf32>
      %cst_22 = arith.constant dense<0.000000e+00> : vector<8x128xf32>
      %47 = vector.multi_reduction <add>, %46, %cst_22 [0] : vector<2x8x128xf32> to vector<8x128xf32>
      %48 = arith.addf %45, %47 : vector<8x128xf32>
      %c0_23 = arith.constant 0 : index
      %c0_24 = arith.constant 0 : index
      %49 = vector.load %arg7[%c0_23, %c0_24] : memref<8x128xf32, #tpu.memory_space<vmem>>, vector<8x128xf32>
      tpu.vector_store %arg7[%c0_23, %c0_24], %48 {strides = array<i32>} : memref<8x128xf32, #tpu.memory_space<vmem>>, vector<8x128xf32>,
    } else {
    }
    %c0_i32_3 = arith.constant 0 : i32
    %8 = arith.cmpi eq, %arg1, %c0_i32_3 : i32
    %9 = arith.extui %8 : i1 to i32
    %c0_i32_4 = arith.constant 0 : i32
    %10 = arith.cmpi ne, %9, %c0_i32_4 : i32
    scf.if %10 {
      %c0 = arith.constant 0 : index
      %c0_5 = arith.constant 0 : index
      %11 = vector.load %arg6[%c0, %c0_5] : memref<8x128xf32, #tpu.memory_space<vmem>>, vector<8x128xf32>
      %12 = vector.shape_cast %11 : vector<8x128xf32> to vector<1x8x128xf32>
      %cst = arith.constant dense<0.000000e+00> : vector<1xf32>
      %13 = vector.multi_reduction <add>, %12, %cst [1, 2] : vector<1x8x128xf32> to vector<1xf32>
      %14 = vector.shape_cast %13 : vector<1xf32> to vector<1x1x1xf32>
      %15 = vector.extract %14[0, 0, 0] : f32 from vector<1x1x1xf32>
      %16 = vector.broadcast %15 : f32 to vector<1x1xf32>
      %c0_6 = arith.constant 0 : index
      %c0_7 = arith.constant 0 : index
      %17 = vector.load %arg4[%c0_6, %c0_7] : memref<1x1xf32, #tpu.memory_space<vmem>>, vector<1x1xf32>
      tpu.vector_store %arg4[%c0_6, %c0_7], %16 {strides = array<i32>} : memref<1x1xf32, #tpu.memory_space<vmem>>, vector<1x1xf32>,
      %c0_8 = arith.constant 0 : index
      %c0_9 = arith.constant 0 : index
      %18 = vector.load %arg7[%c0_8, %c0_9] : memref<8x128xf32, #tpu.memory_space<vmem>>, vector<8x128xf32>
      %19 = vector.shape_cast %18 : vector<8x128xf32> to vector<1x8x128xf32>
      %cst_10 = arith.constant dense<0.000000e+00> : vector<1xf32>
      %20 = vector.multi_reduction <add>, %19, %cst_10 [1, 2] : vector<1x8x128xf32> to vector<1xf32>
      %21 = vector.shape_cast %20 : vector<1xf32> to vector<1x1x1xf32>
      %22 = vector.extract %21[0, 0, 0] : f32 from vector<1x1x1xf32>
      %23 = vector.broadcast %22 : f32 to vector<1x1xf32>
      %c0_11 = arith.constant 0 : index
      %c0_12 = arith.constant 0 : index
      %24 = vector.load %arg5[%c0_11, %c0_12] : memref<1x1xf32, #tpu.memory_space<vmem>>, vector<1x1xf32>
      tpu.vector_store %arg5[%c0_11, %c0_12], %23 {strides = array<i32>} : memref<1x1xf32, #tpu.memory_space<vmem>>, vector<1x1xf32>,
    } else {
    }
    return
  }
  func.func @transform_0(%arg0: i32, %arg1: i32) -> (i32, i32) {
    %c1_i32 = arith.constant 1 : i32
    %0 = arith.muli %arg0, %c1_i32 : i32
    %1 = arith.addi %0, %arg1 : i32
    %c0_i32 = arith.constant 0 : i32
    %2 = arith.minsi %1, %c0_i32 : i32
    %c0_i32_0 = arith.constant 0 : i32
    %c0_i32_1 = arith.constant 0 : i32
    return %2, %c0_i32_0 : i32, i32
  }
  func.func @transform_1(%arg0: i32, %arg1: i32) -> (i32, i32) {
    %c1_i32 = arith.constant 1 : i32
    %0 = arith.muli %arg0, %c1_i32 : i32
    %1 = arith.addi %0, %arg1 : i32
    %c0_i32 = arith.constant 0 : i32
    %2 = arith.minsi %1, %c0_i32 : i32
    %c0_i32_0 = arith.constant 0 : i32
    %c0_i32_1 = arith.constant 0 : i32
    return %2, %c0_i32_0 : i32, i32
  }
  func.func @transform_2(%arg0: i32, %arg1: i32) -> (i32, i32) {
    %c0_i32 = arith.constant 0 : i32
    %c0_i32_0 = arith.constant 0 : i32
    return %arg0, %c0_i32 : i32, i32
  }
  func.func @transform_3(%arg0: i32, %arg1: i32) -> (i32, i32) {
    %c0_i32 = arith.constant 0 : i32
    %c0_i32_0 = arith.constant 0 : i32
    return %arg0, %c0_i32 : i32, i32
  }
}

</mosaic_0001>

<llo_original>
// kernel: tpu_custom_call.1
$region0: #{tpu_custom_call.1}
  #allocation0 [shape = 'u32[]', space=smem, size = 0x4, offset = 0x4, fixed_abs, tag = 'smem constant byte address 0x4 - core index']
  #allocation1 [shape = 'u32[144,128]{1,0:T(1,128)}', space=vmem, size = 0x12000, scoped, tag = 'internal scratch']
  #allocation2 [shape = 'f32[8,128]{1,0:T(8,128)}', space=vmem, size = 0x1000, scoped, tag = 'scratch operand']
  #allocation3 [shape = 'f32[8,128]{1,0:T(8,128)}', space=vmem, size = 0x1000, scoped, tag = 'scratch operand']
  %s0 = inlined_call_operand.hbm [shape: f32[16,128], index: 0, kind: input, shape index: {}]
  %s1 = inlined_call_operand.hbm [shape: f32[16,128], index: 1, kind: input, shape index: {}]
  %s2 = inlined_call_operand.hbm [shape: f32[1,1], index: 2, kind: output, shape index: {0}]
  %s3 = inlined_call_operand.hbm [shape: f32[1,1], index: 3, kind: output, shape index: {1}]
  %4 = xla_tuple %s2, %s3
  %s5 = sld [smem:[#allocation0]]
  $region46: #{tpu_custom_call.1} parent=0
    _
  %s7 = ssub.s32 1, %s5
  %s8 = scalar_select 0, %s7, %s5
  $region1: #{tpu_custom_call.1} parent=0
    #allocation4 [shape = 'u8[8192]{0}', space=vmem, size = 0x2000, scoped, tag = 'input window, operand 0, single buffered']
    #allocation5 [shape = 's32[1]{0}', space=sflag, size = 0x4, scoped, tag = 'scoped memory for tpu_custom_call.1']
    #allocation6 [shape = 's32[1]{0}', space=sflag, size = 0x4, scoped, tag = 'scoped memory for tpu_custom_call.1']
    #allocation7 [shape = 'u8[8192]{0}', space=vmem, size = 0x2000, scoped, tag = 'input window, operand 1, single buffered']
    #allocation8 [shape = 's32[1]{0}', space=sflag, size = 0x4, scoped, tag = 'scoped memory for tpu_custom_call.1']
    #allocation9 [shape = 'u8[512]{0}', space=vmem, size = 0x400, scoped, tag = 'output window, operand 0, single buffered']
    #allocation10 [shape = 'u8[512]{0}', space=vmem, size = 0x400, scoped, tag = 'output window, operand 1, single buffered']
    #allocation11 [shape = 's32[1]{0}', space=sflag, size = 0x4, scoped, tag = 'scoped memory for tpu_custom_call.1']
    %9 = vsyncpa [#allocation5], 0
    %10 = vsyncpa [#allocation8], 0
    %11 = vsyncpa [#allocation6], 0
    %12 = vsyncpa [#allocation11], 0
    // Predicated region
    $region2: #{tpu_custom_call.1} parent=1 // pred_check
      _
    $region3: #{tpu_custom_call.1} parent=1 // pred_check_branch
      %14 = sbr.rel (0) target = $region5
    $region4: #{tpu_custom_call.1} parent=1 // pred_region
      %s15 = sadd.s32 0, 0
      %p16 = scmp.lt.s32.totalorder %s15, 0
      %s17 = scalar_select %p16, %s15, 0
      %s18 = smul.u32 2, %s17
      %s20 = ssub.s32 256, 256
      %21 = vsyncadd [#allocation5], %s20
      %s22 = smul.addr %s18, 128
      %s23 = scalar_lea.hbm %s0, %s22
      %s24 = sshll.u32 [#allocation4], 4
      %s25 = int_to_ptr.vmem [resolvable:$true] %s24
      %30 = dma.hbm_to_vmem [thread:$0]  %s23, 256, %s25, [#allocation5], 128, 128, 8
    $region5: #{tpu_custom_call.1} parent=1 // pred_fallthru
      _
    // Predicated region
    $region6: #{tpu_custom_call.1} parent=1 // pred_check
      _
    $region7: #{tpu_custom_call.1} parent=1 // pred_check_branch
      %32 = sbr.rel (0) target = $region9
    $region8: #{tpu_custom_call.1} parent=1 // pred_region
      %s33 = sadd.s32 0, 0
      %p34 = scmp.lt.s32.totalorder %s33, 0
      %s35 = scalar_select %p34, %s33, 0
      %s36 = smul.u32 2, %s35
      %s38 = ssub.s32 256, 256
      %39 = vsyncadd [#allocation8], %s38
      %s40 = smul.addr %s36, 128
      %s41 = scalar_lea.hbm %s1, %s40
      %s42 = sshll.u32 [#allocation7], 4
      %s43 = int_to_ptr.vmem [resolvable:$true] %s42
      %48 = dma.hbm_to_vmem [thread:$0]  %s41, 256, %s43, [#allocation8], 128, 128, 8
    $region9: #{tpu_custom_call.1} parent=1 // pred_fallthru
      _
    // Predicated region
    $region10: #{tpu_custom_call.1} parent=1 // pred_check
      _
    $region11: #{tpu_custom_call.1} parent=1 // pred_check_branch
      %50 = sbr.rel (0) target = $region13
    $region12: #{tpu_custom_call.1} parent=1 // pred_region
      %51 = dma.done [#allocation5], 256
    $region13: #{tpu_custom_call.1} parent=1 // pred_fallthru
      _
    // Predicated region
    $region14: #{tpu_custom_call.1} parent=1 // pred_check
      _
    $region15: #{tpu_custom_call.1} parent=1 // pred_check_branch
      %53 = sbr.rel (0) target = $region17
    $region16: #{tpu_custom_call.1} parent=1 // pred_region
      %54 = dma.done [#allocation8], 256
    $region17: #{tpu_custom_call.1} parent=1 // pred_fallthru
      _
    %s55 = sadd.s32 0, 0
    %p56 = scmp.lt.s32.totalorder %s55, 0
    %s57 = scalar_select %p56, %s55, 0
    %s58 = smul.u32 2, %s57
    %s59 = sadd.s32 0, 0
    %p60 = scmp.lt.s32.totalorder %s59, 0
    %s61 = scalar_select %p60, %s59, 0
    %s62 = smul.u32 2, %s61
    %s63 = sadd.s32 0, 0
    %p64 = scmp.eq.s32.totalorder 0, 0
    // Predicated region
    $region18: #{tpu_custom_call.1} parent=1 // pred_check
      %p65 = pneg %p64
    $region19: #{tpu_custom_call.1} parent=1 // pred_check_branch
      %67 = sbr.rel (%p65) target = $region21
    $region20: #{tpu_custom_call.1} parent=1 // pred_region
      %68 = vst [vmem:[#allocation2] sm:$0xff] 0.0
      %69 = vst [vmem:[#allocation3] sm:$0xff] 0.0
    $region21: #{tpu_custom_call.1} parent=1 // pred_fallthru
      _
    %p70 = scmp.lt.s32.totalorder %s63, 1
    // Predicated region
    $region22: #{tpu_custom_call.1} parent=1 // pred_check
      %p71 = pneg %p70
    $region23: #{tpu_custom_call.1} parent=1 // pred_check_branch
      %73 = sbr.rel (%p71) target = $region25
    $region24: #{tpu_custom_call.1} parent=1 // pred_region
      %v74 = vld [vmem:[#allocation4] sm:$0xff]
      %v75 = vld [vmem:[#allocation4 + $0x8] sm:$0xff]
      %v76 = vld [vmem:[#allocation7] sm:$0xff]
      %v77 = vld [vmem:[#allocation7 + $0x8] sm:$0xff]
      %v78 = vadd.f32 %v74, %v76
      %v79 = vadd.f32 %v75, %v77
      %v80 = vmul.f32 %v74, %v76
      %v81 = vmul.f32 %v75, %v77
      %v82 = vmul.f32 %v80, 2.0
      %v83 = vmul.f32 %v81, 2.0
      %v84 = vsub.f32 %v78, %v82
      %v85 = vsub.f32 %v79, %v83
      %v86 = vmax.f32 %v84, 0.0
      %v87 = vmax.f32 %v85, 0.0
      %v88 = vlog2.pop %v74
      %v89 = vmul.f32 %v88, 0.6931472
      %v90 = vlog2.pop %v75
      %v91 = vmul.f32 %v90, 0.6931472
      %v92 = vmax.f32 %v89, -100.0
      %v93 = vmax.f32 %v91, -100.0
      %v94 = vsub.f32 1.0, %v74
      %v95 = vsub.f32 1.0, %v75
      %v96 = vlog2.pop %v94
      %v97 = vmul.f32 %v96, 0.6931472
      %v98 = vlog2.pop %v95
      %v99 = vmul.f32 %v98, 0.6931472
      %v100 = vmax.f32 %v97, -100.0
      %v101 = vmax.f32 %v99, -100.0
      %v102 = vsub.f32 %v92, %v100
      %v103 = vsub.f32 %v93, %v101
      %v104 = vmul.f32 %v76, %v102
      %v105 = vmul.f32 %v77, %v103
      %v106 = vadd.f32 %v100, %v104
      %v107 = vadd.f32 %v101, %v105
      %v108 = vsub.f32 0.0, %v106
      %v109 = vsub.f32 0.0, %v107
      %v110 = vrsqrt.pop %v86
      %v111 = vmul.f32 %v86, %v110
      %vm112 = vcmp.eq.f32.partialorder %v86, inf
      %v113 = vsel %vm112, %v86, %v111
      %vm114 = vcmp.eq.f32.partialorder %v86, 0.0
      %v115 = vand.u32 %v86, 2147483648
      %v116 = vsel %vm114, %v115, %v113
      %v117 = vrsqrt.pop %v87
      %v118 = vmul.f32 %v87, %v117
      %vm119 = vcmp.eq.f32.partialorder %v87, inf
      %v120 = vsel %vm119, %v87, %v118
      %vm121 = vcmp.eq.f32.partialorder %v87, 0.0
      %v122 = vand.u32 %v87, 2147483648
      %v123 = vsel %vm121, %v122, %v120
      %v124 = vmul.f32 %v86, %v116
      %v125 = vmul.f32 %v87, %v123
      %v126 = vmul.f32 %v76, -0.5
      %v127 = vmul.f32 %v77, -0.5
      %v128 = vadd.f32 %v126, 0.75
      %v129 = vadd.f32 %v127, 0.75
      %v130 = vmul.f32 %v128, %v124
      %v131 = vmul.f32 %v129, %v125
      %v132 = vld [vmem:[#allocation2] sm:$0xff]
      %v133 = vadd.f32 %v108, %v109
      %v134 = vadd.f32 %v132, %v133
      %135 = vst [vmem:[#allocation2] sm:$0xff] %v134
      %v136 = vld [vmem:[#allocation3] sm:$0xff]
      %v137 = vadd.f32 %v130, %v131
      %v138 = vadd.f32 %v136, %v137
      %139 = vst [vmem:[#allocation3] sm:$0xff] %v138
    $region25: #{tpu_custom_call.1} parent=1 // pred_fallthru
      _
    // Predicated region
    $region26: #{tpu_custom_call.1} parent=1 // pred_check
      %p140 = pneg %p64
    $region27: #{tpu_custom_call.1} parent=1 // pred_check_branch
      %142 = sbr.rel (%p140) target = $region29
    $region28: #{tpu_custom_call.1} parent=1 // pred_region
      %v143 = vld [vmem:[#allocation2] sm:$0xff]
      %144 = vadd.xlane.f32.xlu0 %v143
      %v145 = vpop.xlane.xlu0 %144
      %v146 = vrot.slane %v145, 4
      %v147 = vadd.f32 %v145, %v146
      %v148 = vrot.slane %v147, 2
      %v149 = vadd.f32 %v147, %v148
      %v150 = vrot.slane %v149, 1
      %v151 = vadd.f32 %v149, %v150
      %s152 = vtos %v151
      %v153 = vstv %s152
      %vm154 = vcmask 0
      %155 = vst.msk [vmem:[#allocation9] sm:$0x1] %vm154, %v153
      %v156 = vld [vmem:[#allocation3] sm:$0xff]
      %157 = vadd.xlane.f32.xlu0 %v156
      %v158 = vpop.xlane.xlu0 %157
      %v159 = vrot.slane %v158, 4
      %v160 = vadd.f32 %v158, %v159
      %v161 = vrot.slane %v160, 2
      %v162 = vadd.f32 %v160, %v161
      %v163 = vrot.slane %v162, 1
      %v164 = vadd.f32 %v162, %v163
      %s165 = vtos %v164
      %v166 = vstv %s165
      %167 = vst.msk [vmem:[#allocation10] sm:$0x1] %vm154, %v166
    $region29: #{tpu_custom_call.1} parent=1 // pred_fallthru
      _
    // Predicated region
    $region30: #{tpu_custom_call.1} parent=1 // pred_check
      _
    $region31: #{tpu_custom_call.1} parent=1 // pred_check_branch
      %169 = sbr.rel (0) target = $region33
    $region32: #{tpu_custom_call.1} parent=1 // pred_region
      %s171 = ssub.s32 16, 16
      %172 = vsyncadd [#allocation6], %s171
      %s174 = sshll.u32 [#allocation9], 4
      %s175 = int_to_ptr.vmem [resolvable:$true] %s174
      %177 = dma.vmem_to_hbm [thread:$0]  %s175, 16, %s2, [#allocation6]
    $region33: #{tpu_custom_call.1} parent=1 // pred_fallthru
      _
    // Predicated region
    $region34: #{tpu_custom_call.1} parent=1 // pred_check
      _
    $region35: #{tpu_custom_call.1} parent=1 // pred_check_branch
      %179 = sbr.rel (0) target = $region37
    $region36: #{tpu_custom_call.1} parent=1 // pred_region
      %s181 = ssub.s32 16, 16
      %182 = vsyncadd [#allocation11], %s181
      %s184 = sshll.u32 [#allocation10], 4
      %s185 = int_to_ptr.vmem [resolvable:$true] %s184
      %187 = dma.vmem_to_hbm [thread:$0]  %s185, 16, %s3, [#allocation11]
    $region37: #{tpu_custom_call.1} parent=1 // pred_fallthru
      _
    // Predicated region
    $region38: #{tpu_custom_call.1} parent=1 // pred_check
      _
    $region39: #{tpu_custom_call.1} parent=1 // pred_check_branch
      %189 = sbr.rel (0) target = $region41
    $region40: #{tpu_custom_call.1} parent=1 // pred_region
      %190 = dma.done [#allocation6], 16
    $region41: #{tpu_custom_call.1} parent=1 // pred_fallthru
      _
    // Predicated region
    $region42: #{tpu_custom_call.1} parent=1 // pred_check
      _
    $region43: #{tpu_custom_call.1} parent=1 // pred_check_branch
      %192 = sbr.rel (0) target = $region45
    $region44: #{tpu_custom_call.1} parent=1 // pred_region
      %193 = dma.done [#allocation11], 16
    $region45: #{tpu_custom_call.1} parent=1 // pred_fallthru
      _
    %194 = vsyncpa [#allocation5], 1
    %195 = vsyncpa [#allocation8], 1
    %196 = vsyncpa [#allocation6], 1
    %197 = vsyncpa [#allocation11], 1

</llo_original>
